<compile_context>
chip_gen: v7x
topology: tpu7x:2x2x1
jax: 0.10.0
libtpu: 0.0.40
codegen_flags: <defaults>
</compile_context>

<pallas_src>
import functools

import jax
import jax.numpy as jnp
from jax import lax
from jax.experimental import pallas as pl
from jax.experimental.pallas import tpu as pltpu


def _cos_loss_kernel(q_ref, p_ref, out_ref,
                     acc_dots, acc_qsq, acc_psq, acc_pos, pos_sc, inv_q_sc,
                     acc_row, *, inv_temperature: float):
    """Grid = (row_blocks i, col_blocks j [rotated], D_blocks k)."""
    j = pl.program_id(1)
    k = pl.program_id(2)
    nj = pl.num_programs(1)
    nk = pl.num_programs(2)

    # ---- init accumulators --------------------------------------------------
    @pl.when(k == 0)
    def _():
        acc_dots[...] = jnp.zeros_like(acc_dots)
        acc_psq[...] = jnp.zeros_like(acc_psq)

    @pl.when(jnp.logical_and(j == 0, k == 0))
    def _():
        acc_qsq[...] = jnp.zeros_like(acc_qsq)
        acc_pos[...] = jnp.zeros_like(acc_pos)
        acc_row[...] = jnp.zeros_like(acc_row)

    # ---- D-block accumulation ------------------------------------------------
    q = q_ref[...]          # [TM, TK] native dtype (bf16 stays bf16 for the MXU)
    p = p_ref[...]          # [TN, TK]

    # q @ p^T without materializing a transpose of p; f32 accumulation on MXU.
    acc_dots[...] += lax.dot_general(
        q, p, (((1,), (1,)), ((), ())), preferred_element_type=jnp.float32)

    pf = p.astype(jnp.float32)
    acc_psq[...] += jnp.sum(pf * pf, axis=-1, keepdims=True)       # [TN, 1]

    @pl.when(j == 0)
    def _():
        # j == 0 is the diagonal block: its passage rows are the positives for
        # the query rows of this tile (TM == TN, square tiling of B).
        qf = q.astype(jnp.float32)
        acc_qsq[...] += jnp.sum(qf * qf, axis=-1, keepdims=True)   # [TM, 1]
        acc_pos[...] += jnp.sum(qf * pf, axis=-1, keepdims=True)   # [TM, 1]

    # ---- epilogue: similarities for this (row, col) tile at full D -----------
    @pl.when(k == nk - 1)
    def _():
        # Per-row inverse norms; single EUP rsqrt each.  Clamp matches the
        # reference's 1e-8 clamp on the norm (1e-16 on the squared norm).
        inv_pn = lax.rsqrt(jnp.maximum(acc_psq[...], 1e-16))              # [TN,1]

        @pl.when(j == 0)
        def _():
            # Query-side rsqrt (with 1/T folded in) computed once per row
            # block and cached; positives / T for this row tile.
            inv_q_sc[...] = inv_temperature * lax.rsqrt(
                jnp.maximum(acc_qsq[...], 1e-16))                          # [TM,1]
            pos_sc[...] = acc_pos[...] * inv_q_sc[...] * inv_pn            # [TM,1]

        inv_qn = inv_q_sc[...]
        sim = acc_dots[...] * (inv_qn * inv_pn.T)    # [TM, TN], already / T
        diff = pos_sc[...] - sim                     # pos_i - neg_ij
        # stable -log(sigmoid(diff)) == softplus(-diff)
        nls = jnp.maximum(-diff, 0.0) + jnp.log1p(jnp.exp(-jnp.abs(diff)))
        acc_row[...] += jnp.sum(nls, axis=-1, keepdims=True)

        @pl.when(j == nj - 1)
        def _():
            out_ref[...] = acc_row[...]


def _pick_block(n, candidates):
    for c in candidates:
        if c <= n and n % c == 0:
            return c
    return n


def cosine_similarity_loss(query_embeddings, passage_embeddings,
                           temperature: float = 0.05,
                           block_rows=None, block_d=None):
    """query_embeddings, passage_embeddings: [B, D] -> scalar loss (f32)."""
    B, D = query_embeddings.shape
    assert passage_embeddings.shape == (B, D)
    if float(temperature) == 0.0:
        # The PyTorch module's default temperature=0.0 divides by zero.
        raise ValueError("temperature must be nonzero")

    itemsize = jnp.dtype(query_embeddings.dtype).itemsize

    # MXU-friendly row tiles: prefer 256 (v6e/v7x 2x256x256 MXU); 128 suits v5e.
    tm = block_rows if block_rows is not None else _pick_block(
        B, (256, 128, 64, 32, 16, 8))

    if block_d is not None:
        tk = block_d
    else:
        # Prefer keeping the whole feature dim resident: the query block index
        # then never changes across the column loop, so Pallas DMAs each query
        # row block once per row block (instead of once per (row, col) tile),
        # halving HBM traffic.  Fall back to blocked-D for very large D.
        full_d_bytes = 4 * tm * D * itemsize + 4 * tm * tm  # q+p dbl-buffered + acc
        if full_d_bytes <= 24 * 1024 * 1024:
            tk = D
        else:
            tk = _pick_block(D, (512, 256, 128))
    assert B % tm == 0 and D % tk == 0, "block sizes must divide (B, D)"
    gi = B // tm     # row blocks == col blocks (square tiling, TM == TN)
    gk = D // tk

    # VMEM working set estimate (double-buffered inputs + accumulators).
    est_vmem = 2 * (2 * tm * tk * itemsize) + tm * tm * 4 + 8 * tm * 4
    vmem_limit = min(max(32 * 1024 * 1024, int(est_vmem * 1.25)),
                     128 * 1024 * 1024)

    kernel = functools.partial(_cos_loss_kernel,
                               inv_temperature=1.0 / float(temperature))

    row_sums = pl.pallas_call(
        kernel,
        out_shape=jax.ShapeDtypeStruct((B, 1), jnp.float32),
        grid_spec=pltpu.PrefetchScalarGridSpec(
            num_scalar_prefetch=0,
            grid=(gi, gi, gk),
            in_specs=[
                # query rows: depend on (i, k) only (resident across j when gk==1)
                pl.BlockSpec((tm, tk), lambda i, j, k: (i, k)),
                # passage rows: rotated so j == 0 is the diagonal block
                pl.BlockSpec((tm, tk), lambda i, j, k: ((i + j) % gi, k)),
            ],
            out_specs=pl.BlockSpec((tm, 1), lambda i, j, k: (i, 0)),
            scratch_shapes=[
                pltpu.VMEM((tm, tm), jnp.float32),  # dots accumulator
                pltpu.VMEM((tm, 1), jnp.float32),   # sum q^2 per row
                pltpu.VMEM((tm, 1), jnp.float32),   # sum p^2 per col-block row
                pltpu.VMEM((tm, 1), jnp.float32),   # sum q*p (positives)
                pltpu.VMEM((tm, 1), jnp.float32),   # pos similarities / T
                pltpu.VMEM((tm, 1), jnp.float32),   # cached rsqrt(q)/T
                pltpu.VMEM((tm, 1), jnp.float32),   # per-row loss sums
            ],
        ),
        compiler_params=pltpu.CompilerParams(
            dimension_semantics=("parallel", "arbitrary", "arbitrary"),
            vmem_limit_bytes=vmem_limit,
        ),
    )(query_embeddings, passage_embeddings)

    # Tiny final reduction stays in plain XLA.
    return jnp.sum(row_sums) / jnp.float32(B * B)


def _reference_loss(q, p, temperature):
    q = q.astype(jnp.float32)
    p = p.astype(jnp.float32)
    qn = jnp.linalg.norm(q, axis=-1)
    pn = jnp.linalg.norm(p, axis=-1)
    pos = jnp.sum(q * p, axis=-1) / jnp.maximum(qn * pn, 1e-8) / temperature
    neg = (q @ p.T) / jnp.maximum(qn[:, None] * pn[None, :], 1e-8) / temperature
    diff = pos[:, None] - neg
    return -jnp.mean(jax.nn.log_sigmoid(diff))


if __name__ == "__main__":
    temperature = 0.05  # torch default 0.0 is a divide-by-zero; use a real value
    key = jax.random.PRNGKey(0)
    kq1, kp1, kq2, kp2 = jax.random.split(key, 4)

    # Case 1: tiny shape consistent with the module (single-tile grid, tk == D).
    q1 = jax.random.normal(kq1, (8, 32), dtype=jnp.float32)
    p1 = jax.random.normal(kp1, (8, 32), dtype=jnp.float32)
    loss1 = jax.block_until_ready(cosine_similarity_loss(q1, p1, temperature))
    ref1 = _reference_loss(q1, p1, temperature)
    assert jnp.allclose(loss1, ref1, rtol=1e-4, atol=1e-6), (loss1, ref1)

    # Case 2: exercises the tiled (row, col, D) grid with rotated diagonal and
    # D-block accumulation (explicit block_d < D).
    q2 = jax.random.normal(kq2, (16, 256), dtype=jnp.float32)
    p2 = jax.random.normal(kp2, (16, 256), dtype=jnp.float32)
    loss2 = jax.block_until_ready(
        cosine_similarity_loss(q2, p2, temperature, block_rows=8, block_d=128))
    ref2 = _reference_loss(q2, p2, temperature)
    assert jnp.allclose(loss2, ref2, rtol=1e-4, atol=1e-6), (loss2, ref2)

    # Case 3: default heuristic keeps the whole feature dim resident (tk == D)
    # while still tiling rows/cols (exercises the rotated column loop with a
    # query block fetched once per row block).
    loss3 = jax.block_until_ready(
        cosine_similarity_loss(q2, p2, temperature, block_rows=8))
    assert jnp.allclose(loss3, ref2, rtol=1e-4, atol=1e-6), (loss3, ref2)

    print("KERNEL_OK")
</pallas_src>

<mosaic_0001>
module attributes {stable_mosaic.version = 11 : i64} {
  func.func @_cos_loss_kernel(%arg0: i32, %arg1: i32, %arg2: i32, %arg3: memref<8x32xf32, #tpu.memory_space<vmem>>, %arg4: memref<8x32xf32, #tpu.memory_space<vmem>>, %arg5: memref<8x1xf32, #tpu.memory_space<vmem>>, %arg6: memref<8x8xf32, #tpu.memory_space<vmem>>, %arg7: memref<8x1xf32, #tpu.memory_space<vmem>>, %arg8: memref<8x1xf32, #tpu.memory_space<vmem>>, %arg9: memref<8x1xf32, #tpu.memory_space<vmem>>, %arg10: memref<8x1xf32, #tpu.memory_space<vmem>>, %arg11: memref<8x1xf32, #tpu.memory_space<vmem>>, %arg12: memref<8x1xf32, #tpu.memory_space<vmem>>) attributes {dimension_semantics = [#tpu.dimension_semantics<parallel>, #tpu.dimension_semantics<arbitrary>, #tpu.dimension_semantics<arbitrary>], iteration_bounds = array<i64: 1, 1, 1>, scalar_prefetch = 0 : i64, scratch_operands = 7 : i64, tpu.core_type = #tpu.core_type<tc>, window_params = [{transform_indices = @transform_0, window_bounds = array<i64: 8, 32>}, {transform_indices = @transform_1, window_bounds = array<i64: 8, 32>}, {transform_indices = @transform_2, window_bounds = array<i64: 8, 1>}]} {
    %c0_i32 = arith.constant 0 : i32
    %0 = arith.cmpi eq, %arg2, %c0_i32 : i32
    %1 = arith.extui %0 : i1 to i32
    %c0_i32_0 = arith.constant 0 : i32
    %2 = arith.cmpi ne, %1, %c0_i32_0 : i32
    scf.if %2 {
      %cst_20 = arith.constant 0.000000e+00 : f32
      %26 = vector.broadcast %cst_20 : f32 to vector<8x8xf32>
      %c0_21 = arith.constant 0 : index
      %c0_22 = arith.constant 0 : index
      %27 = vector.load %arg6[%c0_21, %c0_22] : memref<8x8xf32, #tpu.memory_space<vmem>>, vector<8x8xf32>
      tpu.vector_store %arg6[%c0_21, %c0_22], %26 {strides = array<i32>} : memref<8x8xf32, #tpu.memory_space<vmem>>, vector<8x8xf32>,
      %cst_23 = arith.constant 0.000000e+00 : f32
      %28 = vector.broadcast %cst_23 : f32 to vector<8x1xf32>
      %c0_24 = arith.constant 0 : index
      %c0_25 = arith.constant 0 : index
      %29 = vector.load %arg8[%c0_24, %c0_25] : memref<8x1xf32, #tpu.memory_space<vmem>>, vector<8x1xf32>
      tpu.vector_store %arg8[%c0_24, %c0_25], %28 {strides = array<i32>} : memref<8x1xf32, #tpu.memory_space<vmem>>, vector<8x1xf32>,
    } else {
    }
    %c0_i32_1 = arith.constant 0 : i32
    %3 = arith.cmpi eq, %arg1, %c0_i32_1 : i32
    %c0_i32_2 = arith.constant 0 : i32
    %4 = arith.cmpi eq, %arg2, %c0_i32_2 : i32
    %5 = arith.andi %3, %4 : i1
    %6 = arith.extui %5 : i1 to i32
    %c0_i32_3 = arith.constant 0 : i32
    %7 = arith.cmpi ne, %6, %c0_i32_3 : i32
    scf.if %7 {
      %cst_20 = arith.constant 0.000000e+00 : f32
      %26 = vector.broadcast %cst_20 : f32 to vector<8x1xf32>
      %c0_21 = arith.constant 0 : index
      %c0_22 = arith.constant 0 : index
      %27 = vector.load %arg7[%c0_21, %c0_22] : memref<8x1xf32, #tpu.memory_space<vmem>>, vector<8x1xf32>
      tpu.vector_store %arg7[%c0_21, %c0_22], %26 {strides = array<i32>} : memref<8x1xf32, #tpu.memory_space<vmem>>, vector<8x1xf32>,
      %cst_23 = arith.constant 0.000000e+00 : f32
      %28 = vector.broadcast %cst_23 : f32 to vector<8x1xf32>
      %c0_24 = arith.constant 0 : index
      %c0_25 = arith.constant 0 : index
      %29 = vector.load %arg9[%c0_24, %c0_25] : memref<8x1xf32, #tpu.memory_space<vmem>>, vector<8x1xf32>
      tpu.vector_store %arg9[%c0_24, %c0_25], %28 {strides = array<i32>} : memref<8x1xf32, #tpu.memory_space<vmem>>, vector<8x1xf32>,
      %cst_26 = arith.constant 0.000000e+00 : f32
      %30 = vector.broadcast %cst_26 : f32 to vector<8x1xf32>
      %c0_27 = arith.constant 0 : index
      %c0_28 = arith.constant 0 : index
      %31 = vector.load %arg12[%c0_27, %c0_28] : memref<8x1xf32, #tpu.memory_space<vmem>>, vector<8x1xf32>
      tpu.vector_store %arg12[%c0_27, %c0_28], %30 {strides = array<i32>} : memref<8x1xf32, #tpu.memory_space<vmem>>, vector<8x1xf32>,
    } else {
    }
    %c0 = arith.constant 0 : index
    %c0_4 = arith.constant 0 : index
    %8 = vector.load %arg3[%c0, %c0_4] : memref<8x32xf32, #tpu.memory_space<vmem>>, vector<8x32xf32>
    %c0_5 = arith.constant 0 : index
    %c0_6 = arith.constant 0 : index
    %9 = vector.load %arg4[%c0_5, %c0_6] : memref<8x32xf32, #tpu.memory_space<vmem>>, vector<8x32xf32>
    %c0_7 = arith.constant 0 : index
    %c0_8 = arith.constant 0 : index
    %10 = vector.load %arg6[%c0_7, %c0_8] : memref<8x8xf32, #tpu.memory_space<vmem>>, vector<8x8xf32>
    %cst = arith.constant dense<0.000000e+00> : vector<8x8xf32>
    %11 = tpu.matmul %8, %9, %cst {dimension_numbers = #tpu.dot_dimension_numbers<[1], [1], [0], [0], [0, 0, 1, 0], [], []>} : vector<8x32xf32>, vector<8x32xf32>, vector<8x8xf32> -> vector<8x8xf32>
    %12 = arith.addf %10, %11 : vector<8x8xf32>
    %c0_9 = arith.constant 0 : index
    %c0_10 = arith.constant 0 : index
    %13 = vector.load %arg6[%c0_9, %c0_10] : memref<8x8xf32, #tpu.memory_space<vmem>>, vector<8x8xf32>
    tpu.vector_store %arg6[%c0_9, %c0_10], %12 {strides = array<i32>} : memref<8x8xf32, #tpu.memory_space<vmem>>, vector<8x8xf32>,
    %c0_11 = arith.constant 0 : index
    %c0_12 = arith.constant 0 : index
    %14 = vector.load %arg8[%c0_11, %c0_12] : memref<8x1xf32, #tpu.memory_space<vmem>>, vector<8x1xf32>
    %15 = arith.mulf %9, %9 : vector<8x32xf32>
    %cst_13 = arith.constant dense<0.000000e+00> : vector<8xf32>
    %16 = vector.multi_reduction <add>, %15, %cst_13 [1] : vector<8x32xf32> to vector<8xf32>
    %17 = vector.shape_cast %16 : vector<8xf32> to vector<8x1xf32>
    %18 = arith.addf %14, %17 : vector<8x1xf32>
    %c0_14 = arith.constant 0 : index
    %c0_15 = arith.constant 0 : index
    %19 = vector.load %arg8[%c0_14, %c0_15] : memref<8x1xf32, #tpu.memory_space<vmem>>, vector<8x1xf32>
    tpu.vector_store %arg8[%c0_14, %c0_15], %18 {strides = array<i32>} : memref<8x1xf32, #tpu.memory_space<vmem>>, vector<8x1xf32>,
    %c0_i32_16 = arith.constant 0 : i32
    %20 = arith.cmpi eq, %arg1, %c0_i32_16 : i32
    %21 = arith.extui %20 : i1 to i32
    %c0_i32_17 = arith.constant 0 : i32
    %22 = arith.cmpi ne, %21, %c0_i32_17 : i32
    scf.if %22 {
      %c0_20 = arith.constant 0 : index
      %c0_21 = arith.constant 0 : index
      %26 = vector.load %arg7[%c0_20, %c0_21] : memref<8x1xf32, #tpu.memory_space<vmem>>, vector<8x1xf32>
      %27 = arith.mulf %8, %8 : vector<8x32xf32>
      %cst_22 = arith.constant dense<0.000000e+00> : vector<8xf32>
      %28 = vector.multi_reduction <add>, %27, %cst_22 [1] : vector<8x32xf32> to vector<8xf32>
      %29 = vector.shape_cast %28 : vector<8xf32> to vector<8x1xf32>
      %30 = arith.addf %26, %29 : vector<8x1xf32>
      %c0_23 = arith.constant 0 : index
      %c0_24 = arith.constant 0 : index
      %31 = vector.load %arg7[%c0_23, %c0_24] : memref<8x1xf32, #tpu.memory_space<vmem>>, vector<8x1xf32>
      tpu.vector_store %arg7[%c0_23, %c0_24], %30 {strides = array<i32>} : memref<8x1xf32, #tpu.memory_space<vmem>>, vector<8x1xf32>,
      %c0_25 = arith.constant 0 : index
      %c0_26 = arith.constant 0 : index
      %32 = vector.load %arg9[%c0_25, %c0_26] : memref<8x1xf32, #tpu.memory_space<vmem>>, vector<8x1xf32>
      %33 = arith.mulf %8, %9 : vector<8x32xf32>
      %cst_27 = arith.constant dense<0.000000e+00> : vector<8xf32>
      %34 = vector.multi_reduction <add>, %33, %cst_27 [1] : vector<8x32xf32> to vector<8xf32>
      %35 = vector.shape_cast %34 : vector<8xf32> to vector<8x1xf32>
      %36 = arith.addf %32, %35 : vector<8x1xf32>
      %c0_28 = arith.constant 0 : index
      %c0_29 = arith.constant 0 : index
      %37 = vector.load %arg9[%c0_28, %c0_29] : memref<8x1xf32, #tpu.memory_space<vmem>>, vector<8x1xf32>
      tpu.vector_store %arg9[%c0_28, %c0_29], %36 {strides = array<i32>} : memref<8x1xf32, #tpu.memory_space<vmem>>, vector<8x1xf32>,
    } else {
    }
    %c0_i32_18 = arith.constant 0 : i32
    %23 = arith.cmpi eq, %arg2, %c0_i32_18 : i32
    %24 = arith.extui %23 : i1 to i32
    %c0_i32_19 = arith.constant 0 : i32
    %25 = arith.cmpi ne, %24, %c0_i32_19 : i32
    scf.if %25 {
      %c0_20 = arith.constant 0 : index
      %c0_21 = arith.constant 0 : index
      %26 = vector.load %arg8[%c0_20, %c0_21] : memref<8x1xf32, #tpu.memory_space<vmem>>, vector<8x1xf32>
      %cst_22 = arith.constant 1.000000e-16 : f32
      %27 = vector.broadcast %cst_22 : f32 to vector<8x1xf32>
      %28 = arith.maximumf %26, %27 : vector<8x1xf32>
      %29 = math.rsqrt %28 : vector<8x1xf32>
      %c0_i32_23 = arith.constant 0 : i32
      %30 = arith.cmpi eq, %arg1, %c0_i32_23 : i32
      %31 = arith.extui %30 : i1 to i32
      %c0_i32_24 = arith.constant 0 : i32
      %32 = arith.cmpi ne, %31, %c0_i32_24 : i32
      scf.if %32 {
        %c0_41 = arith.constant 0 : index
        %c0_42 = arith.constant 0 : index
        %61 = vector.load %arg7[%c0_41, %c0_42] : memref<8x1xf32, #tpu.memory_space<vmem>>, vector<8x1xf32>
        %cst_43 = arith.constant 1.000000e-16 : f32
        %62 = vector.broadcast %cst_43 : f32 to vector<8x1xf32>
        %63 = arith.maximumf %61, %62 : vector<8x1xf32>
        %64 = math.rsqrt %63 : vector<8x1xf32>
        %cst_44 = arith.constant 2.000000e+01 : f32
        %65 = vector.broadcast %cst_44 : f32 to vector<8x1xf32>
        %66 = arith.mulf %65, %64 : vector<8x1xf32>
        %c0_45 = arith.constant 0 : index
        %c0_46 = arith.constant 0 : index
        %67 = vector.load %arg11[%c0_45, %c0_46] : memref<8x1xf32, #tpu.memory_space<vmem>>, vector<8x1xf32>
        tpu.vector_store %arg11[%c0_45, %c0_46], %66 {strides = array<i32>} : memref<8x1xf32, #tpu.memory_space<vmem>>, vector<8x1xf32>,
        %c0_47 = arith.constant 0 : index
        %c0_48 = arith.constant 0 : index
        %68 = vector.load %arg9[%c0_47, %c0_48] : memref<8x1xf32, #tpu.memory_space<vmem>>, vector<8x1xf32>
        %c0_49 = arith.constant 0 : index
        %c0_50 = arith.constant 0 : index
        %69 = vector.load %arg11[%c0_49, %c0_50] : memref<8x1xf32, #tpu.memory_space<vmem>>, vector<8x1xf32>
        %70 = arith.mulf %68, %69 : vector<8x1xf32>
        %71 = arith.mulf %70, %29 : vector<8x1xf32>
        %c0_51 = arith.constant 0 : index
        %c0_52 = arith.constant 0 : index
        %72 = vector.load %arg10[%c0_51, %c0_52] : memref<8x1xf32, #tpu.memory_space<vmem>>, vector<8x1xf32>
        tpu.vector_store %arg10[%c0_51, %c0_52], %71 {strides = array<i32>} : memref<8x1xf32, #tpu.memory_space<vmem>>, vector<8x1xf32>,
      } else {
      }
      %c0_25 = arith.constant 0 : index
      %c0_26 = arith.constant 0 : index
      %33 = vector.load %arg11[%c0_25, %c0_26] : memref<8x1xf32, #tpu.memory_space<vmem>>, vector<8x1xf32>
      %c0_27 = arith.constant 0 : index
      %c0_28 = arith.constant 0 : index
      %34 = vector.load %arg6[%c0_27, %c0_28] : memref<8x8xf32, #tpu.memory_space<vmem>>, vector<8x8xf32>
      %35 = tpu.transpose %29, [1, 0] : vector<8x1xf32> -> vector<1x8xf32>
      %36 = vector.broadcast %33 : vector<8x1xf32> to vector<8x8xf32>
      %37 = vector.broadcast %35 : vector<1x8xf32> to vector<8x8xf32>
      %38 = arith.mulf %36, %37 : vector<8x8xf32>
      %39 = arith.mulf %34, %38 : vector<8x8xf32>
      %c0_29 = arith.constant 0 : index
      %c0_30 = arith.constant 0 : index
      %40 = vector.load %arg10[%c0_29, %c0_30] : memref<8x1xf32, #tpu.memory_space<vmem>>, vector<8x1xf32>
      %41 = vector.broadcast %40 : vector<8x1xf32> to vector<8x8xf32>
      %42 = arith.subf %41, %39 : vector<8x8xf32>
      %cst_31 = arith.constant 0.000000e+00 : f32
      %43 = vector.broadcast %cst_31 : f32 to vector<8x8xf32>
      %44 = arith.subf %43, %42 : vector<8x8xf32>
      %cst_32 = arith.constant 0.000000e+00 : f32
      %45 = vector.broadcast %cst_32 : f32 to vector<8x8xf32>
      %46 = arith.maximumf %44, %45 : vector<8x8xf32>
      %47 = math.absf %42 : vector<8x8xf32>
      %cst_33 = arith.constant 0.000000e+00 : f32
      %48 = vector.broadcast %cst_33 : f32 to vector<8x8xf32>
      %49 = arith.subf %48, %47 : vector<8x8xf32>
      %50 = math.exp %49 : vector<8x8xf32>
      %51 = math.log1p %50 : vector<8x8xf32>
      %52 = arith.addf %46, %51 : vector<8x8xf32>
      %c0_34 = arith.constant 0 : index
      %c0_35 = arith.constant 0 : index
      %53 = vector.load %arg12[%c0_34, %c0_35] : memref<8x1xf32, #tpu.memory_space<vmem>>, vector<8x1xf32>
      %cst_36 = arith.constant dense<0.000000e+00> : vector<8xf32>
      %54 = vector.multi_reduction <add>, %52, %cst_36 [1] : vector<8x8xf32> to vector<8xf32>
      %55 = vector.shape_cast %54 : vector<8xf32> to vector<8x1xf32>
      %56 = arith.addf %53, %55 : vector<8x1xf32>
      %c0_37 = arith.constant 0 : index
      %c0_38 = arith.constant 0 : index
      %57 = vector.load %arg12[%c0_37, %c0_38] : memref<8x1xf32, #tpu.memory_space<vmem>>, vector<8x1xf32>
      tpu.vector_store %arg12[%c0_37, %c0_38], %56 {strides = array<i32>} : memref<8x1xf32, #tpu.memory_space<vmem>>, vector<8x1xf32>,
      %c0_i32_39 = arith.constant 0 : i32
      %58 = arith.cmpi eq, %arg1, %c0_i32_39 : i32
      %59 = arith.extui %58 : i1 to i32
      %c0_i32_40 = arith.constant 0 : i32
      %60 = arith.cmpi ne, %59, %c0_i32_40 : i32
      scf.if %60 {
        %c0_41 = arith.constant 0 : index
        %c0_42 = arith.constant 0 : index
        %61 = vector.load %arg12[%c0_41, %c0_42] : memref<8x1xf32, #tpu.memory_space<vmem>>, vector<8x1xf32>
        %c0_43 = arith.constant 0 : index
        %c0_44 = arith.constant 0 : index
        %62 = vector.load %arg5[%c0_43, %c0_44] : memref<8x1xf32, #tpu.memory_space<vmem>>, vector<8x1xf32>
        tpu.vector_store %arg5[%c0_43, %c0_44], %61 {strides = array<i32>} : memref<8x1xf32, #tpu.memory_space<vmem>>, vector<8x1xf32>,
      } else {
      }
    } else {
    }
    return
  }
  func.func @transform_0(%arg0: i32, %arg1: i32, %arg2: i32) -> (i32, i32) {
    %c0_i32 = arith.constant 0 : i32
    return %arg0, %arg2 : i32, i32
  }
  func.func @transform_1(%arg0: i32, %arg1: i32, %arg2: i32) -> (i32, i32) {
    %0 = arith.addi %arg0, %arg1 : i32
    %c1_i32 = arith.constant 1 : i32
    %c0_i32 = arith.constant 0 : i32
    %1 = arith.cmpi eq, %c1_i32, %c0_i32 : i32
    %c1_i32_0 = arith.constant 1 : i32
    %2 = arith.select %1, %c1_i32_0, %c1_i32 : i32
    %3 = arith.remsi %0, %2 : i32
    %c0_i32_1 = arith.constant 0 : i32
    %4 = arith.cmpi ne, %3, %c0_i32_1 : i32
    %c0_i32_2 = arith.constant 0 : i32
    %5 = arith.cmpi slt, %3, %c0_i32_2 : i32
    %c0_i32_3 = arith.constant 0 : i32
    %6 = arith.cmpi slt, %2, %c0_i32_3 : i32
    %7 = arith.xori %5, %6 : i1
    %8 = arith.andi %7, %4 : i1
    %9 = arith.addi %3, %2 : i32
    %10 = arith.select %8, %9, %3 : i32
    %c0_i32_4 = arith.constant 0 : i32
    return %10, %arg2 : i32, i32
  }
  func.func @transform_2(%arg0: i32, %arg1: i32, %arg2: i32) -> (i32, i32) {
    %c0_i32 = arith.constant 0 : i32
    %c0_i32_0 = arith.constant 0 : i32
    return %arg0, %c0_i32 : i32, i32
  }
}

</mosaic_0001>

<llo_original>
// kernel: tpu_custom_call.1
$region0: #{tpu_custom_call.1}
  #allocation0 [shape = 'u32[]', space=smem, size = 0x4, offset = 0x4, fixed_abs, tag = 'smem constant byte address 0x4 - core index']
  #allocation1 [shape = 'u32[144,128]{1,0:T(1,128)}', space=vmem, size = 0x12000, scoped, tag = 'internal scratch']
  #allocation2 [shape = 'f32[8,8]{1,0:T(8,128)}', space=vmem, size = 0x1000, scoped, tag = 'scratch operand']
  #allocation3 [shape = 'f32[8,1]{1,0:T(8,128)}', space=vmem, size = 0x1000, scoped, tag = 'scratch operand']
  #allocation4 [shape = 'f32[8,1]{1,0:T(8,128)}', space=vmem, size = 0x1000, scoped, tag = 'scratch operand']
  #allocation5 [shape = 'f32[8,1]{1,0:T(8,128)}', space=vmem, size = 0x1000, scoped, tag = 'scratch operand']
  #allocation6 [shape = 'f32[8,1]{1,0:T(8,128)}', space=vmem, size = 0x1000, scoped, tag = 'scratch operand']
  #allocation7 [shape = 'f32[8,1]{1,0:T(8,128)}', space=vmem, size = 0x1000, scoped, tag = 'scratch operand']
  #allocation8 [shape = 'f32[8,1]{1,0:T(8,128)}', space=vmem, size = 0x1000, scoped, tag = 'scratch operand']
  %s0 = inlined_call_operand.hbm [shape: f32[8,32], index: 0, kind: input, shape index: {}]
  %s1 = inlined_call_operand.hbm [shape: f32[8,32], index: 1, kind: input, shape index: {}]
  %s2 = inlined_call_operand.vmem [shape: f32[8,1], index: 2, kind: output, shape index: {}]
  %s3 = sld [smem:[#allocation0]]
  $region50: #{tpu_custom_call.1} parent=0
    _
  %s5 = ssub.s32 1, %s3
  %s6 = scalar_select 0, %s5, %s3
  $region1: #{tpu_custom_call.1} parent=0
    #allocation9 [shape = 'u8[4096]{0}', space=vmem, size = 0x1000, scoped, tag = 'input window, operand 0, single buffered']
    #allocation10 [shape = 's32[1]{0}', space=sflag, size = 0x4, scoped, tag = 'scoped memory for tpu_custom_call.1']
    #allocation11 [shape = 'u8[4096]{0}', space=vmem, size = 0x1000, scoped, tag = 'input window, operand 1, single buffered']
    #allocation12 [shape = 's32[1]{0}', space=sflag, size = 0x4, scoped, tag = 'scoped memory for tpu_custom_call.1']
    %7 = vsyncpa [#allocation10], 0
    %8 = vsyncpa [#allocation12], 0
    // Predicated region
    $region2: #{tpu_custom_call.1} parent=1 // pred_check
      _
    $region3: #{tpu_custom_call.1} parent=1 // pred_check_branch
      %10 = sbr.rel (0) target = $region5
    $region4: #{tpu_custom_call.1} parent=1 // pred_region
      %s12 = ssub.s32 128, 128
      %13 = vsyncadd [#allocation10], %s12
      %s15 = sshll.u32 [#allocation9], 4
      %s16 = int_to_ptr.vmem [resolvable:$true] %s15
      %18 = dma.hbm_to_vmem [thread:$0]  %s0, 128, %s16, [#allocation10]
    $region5: #{tpu_custom_call.1} parent=1 // pred_fallthru
      _
    // Predicated region
    $region6: #{tpu_custom_call.1} parent=1 // pred_check
      _
    $region7: #{tpu_custom_call.1} parent=1 // pred_check_branch
      %20 = sbr.rel (0) target = $region9
    $region8: #{tpu_custom_call.1} parent=1 // pred_region
      %s22 = ssub.s32 128, 128
      %23 = vsyncadd [#allocation12], %s22
      %s25 = sshll.u32 [#allocation11], 4
      %s26 = int_to_ptr.vmem [resolvable:$true] %s25
      %28 = dma.hbm_to_vmem [thread:$0]  %s1, 128, %s26, [#allocation12]
    $region9: #{tpu_custom_call.1} parent=1 // pred_fallthru
      _
    // Predicated region
    $region10: #{tpu_custom_call.1} parent=1 // pred_check
      _
    $region11: #{tpu_custom_call.1} parent=1 // pred_check_branch
      %30 = sbr.rel (0) target = $region13
    $region12: #{tpu_custom_call.1} parent=1 // pred_region
      %31 = dma.done [#allocation10], 128
    $region13: #{tpu_custom_call.1} parent=1 // pred_fallthru
      _
    // Predicated region
    $region14: #{tpu_custom_call.1} parent=1 // pred_check
      _
    $region15: #{tpu_custom_call.1} parent=1 // pred_check_branch
      %33 = sbr.rel (0) target = $region17
    $region16: #{tpu_custom_call.1} parent=1 // pred_region
      %34 = dma.done [#allocation12], 128
    $region17: #{tpu_custom_call.1} parent=1 // pred_fallthru
      _
    %p35 = scmp.eq.s32.totalorder 0, 0
    // Predicated region
    $region18: #{tpu_custom_call.1} parent=1 // pred_check
      %p36 = pneg %p35
    $region19: #{tpu_custom_call.1} parent=1 // pred_check_branch
      %38 = sbr.rel (%p36) target = $region21
    $region20: #{tpu_custom_call.1} parent=1 // pred_region
      %vm39 = vcmask 64512
      %40 = vst.msk [vmem:[#allocation2] sm:$0xff] %vm39, 0.0
      %vm41 = vcmask 7168
      %42 = vst.msk [vmem:[#allocation4] sm:$0xff] %vm41, 0.0
    $region21: #{tpu_custom_call.1} parent=1 // pred_fallthru
      _
    %p43 = scmp.eq.s32.totalorder 0, 0
    %p44 = pnand %p43, %p35
    %p45 = pneg %p44
    // Predicated region
    $region22: #{tpu_custom_call.1} parent=1 // pred_check
      _
    $region23: #{tpu_custom_call.1} parent=1 // pred_check_branch
      %47 = sbr.rel (%p44) target = $region25
    $region24: #{tpu_custom_call.1} parent=1 // pred_region
      %vm48 = vcmask 7168
      %49 = vst.msk [vmem:[#allocation3] sm:$0xff] %vm48, 0.0
      %50 = vst.msk [vmem:[#allocation5] sm:$0xff] %vm48, 0.0
      %51 = vst.msk [vmem:[#allocation8] sm:$0xff] %vm48, 0.0
    $region25: #{tpu_custom_call.1} parent=1 // pred_fallthru
      _
    %v52 = vld [vmem:[#allocation9] sm:$0xff]
    %v53 = vld [vmem:[#allocation11] sm:$0xff]
    %v54 = vld [vmem:[#allocation2] sm:$0xff]
    %vm55 = vcmask 261120
    %v57 = vsel %vm55, %v52, 0
    %v60 = vsel %vm55, %v53, 0
    %62 = vmatprep.subr.mxu0 0.0
    %63 = vmatpush1.xpose.msra.mxu0 %v60
    %64 = vmatprep.subr.mxu0 0.0
    %65 = vmatpush1.xpose.msra.mxu0 0.0
    %66 = vmatprep.subr.mxu0 0.0
    %67 = vmatpush1.xpose.msra.mxu0 0.0
    %68 = vmatprep.subr.mxu0 0.0
    %69 = vmatpush1.xpose.msra.mxu0 0.0
    %70 = vmatprep.subr.mxu0 0.0
    %71 = vmatpush1.xpose.msra.mxu0 0.0
    %72 = vmatprep.subr.mxu0 0.0
    %73 = vmatpush1.xpose.msra.mxu0 0.0
    %74 = vmatprep.subr.mxu0 0.0
    %75 = vmatpush1.xpose.msra.mxu0 0.0
    %76 = vmatprep.subr.mxu0 0.0
    %77 = vmatpush1.xpose.msra.mxu0 0.0
    %78 = vmatprep.subr.mxu0 0.0
    %79 = vmatpush1.xpose.msra.mxu0 0.0
    %80 = vmatprep.subr.mxu0 0.0
    %81 = vmatpush1.xpose.msra.mxu0 0.0
    %82 = vmatprep.subr.mxu0 0.0
    %83 = vmatpush1.xpose.msra.mxu0 0.0
    %84 = vmatprep.subr.mxu0 0.0
    %85 = vmatpush1.xpose.msra.mxu0 0.0
    %86 = vmatprep.subr.mxu0 0.0
    %87 = vmatpush1.xpose.msra.mxu0 0.0
    %88 = vmatprep.subr.mxu0 0.0
    %89 = vmatpush1.xpose.msra.mxu0 0.0
    %90 = vmatprep.subr.mxu0 0.0
    %91 = vmatpush1.xpose.msra.mxu0 0.0
    %92 = vmatprep.subr.mxu0 0.0
    %93 = vmatpush1.xpose.msra.mxu0 0.0
    %94 = vmatprep.subr.mxu0 0.0
    %95 = vmatpush1.xpose.msra.mxu0 0.0
    %96 = vmatprep.subr.mxu0 0.0
    %97 = vmatpush1.xpose.msra.mxu0 0.0
    %98 = vmatprep.subr.mxu0 0.0
    %99 = vmatpush1.xpose.msra.mxu0 0.0
    %100 = vmatprep.subr.mxu0 0.0
    %101 = vmatpush1.xpose.msra.mxu0 0.0
    %102 = vmatprep.subr.mxu0 0.0
    %103 = vmatpush1.xpose.msra.mxu0 0.0
    %104 = vmatprep.subr.mxu0 0.0
    %105 = vmatpush1.xpose.msra.mxu0 0.0
    %106 = vmatprep.subr.mxu0 0.0
    %107 = vmatpush1.xpose.msra.mxu0 0.0
    %108 = vmatprep.subr.mxu0 0.0
    %109 = vmatpush1.xpose.msra.mxu0 0.0
    %110 = vmatprep.subr.mxu0 0.0
    %111 = vmatpush1.xpose.msra.mxu0 0.0
    %112 = vmatprep.subr.mxu0 0.0
    %113 = vmatpush1.xpose.msra.mxu0 0.0
    %114 = vmatprep.subr.mxu0 0.0
    %115 = vmatpush1.xpose.msra.mxu0 0.0
    %116 = vmatprep.subr.mxu0 0.0
    %117 = vmatpush1.xpose.msra.mxu0 0.0
    %118 = vmatprep.subr.mxu0 0.0
    %119 = vmatpush1.xpose.msra.mxu0 0.0
    %120 = vmatprep.subr.mxu0 0.0
    %121 = vmatpush1.xpose.msra.mxu0 0.0
    %122 = vmatprep.subr.mxu0 0.0
    %123 = vmatpush1.xpose.msra.mxu0 0.0
    %124 = vmatprep.subr.mxu0 0.0
    %125 = vmatpush1.xpose.msra.mxu0 0.0
    %126 = vmatprep.mubr.f32.mxu0 0.0
    %127 = vmatmul.mubr.f32.gmra.mrb[0].mxu0 %v57
    %v128 = vpop.f32.mrb[0].mxu0
    %v129 = vadd.f32 0.0, %v128
    %v130 = vpop.f32.mrb[0].mxu0
    %131 = vdwg.mxu0
    %v132 = vadd.f32 %v54, %v129
    %vm133 = vcmask 64512
    %134 = vst.msk [vmem:[#allocation2] sm:$0xff] %vm133, %v132
    %v135 = vld [vmem:[#allocation4] sm:$0xff]
    %v136 = vmul.f32 %v53, %v53
    %v137 = vsel %vm55, %v136, 0.0
    %138 = vadd.xlane.f32.xlu0 %v137
    %v139 = vpop.xlane.xlu0 %138
    %v140 = vadd.f32 %v135, %v139
    %vm141 = vcmask 7168
    %142 = vst.msk [vmem:[#allocation4] sm:$0xff] %vm141, %v140
    // Predicated region
    $region26: #{tpu_custom_call.1} parent=1 // pred_check
      %p143 = pneg %p43
    $region27: #{tpu_custom_call.1} parent=1 // pred_check_branch
      %145 = sbr.rel (%p143) target = $region29
    $region28: #{tpu_custom_call.1} parent=1 // pred_region
      %v146 = vld [vmem:[#allocation3] sm:$0xff]
      %v147 = vmul.f32 %v52, %v52
      %v148 = vsel %vm55, %v147, 0.0
      %149 = vadd.xlane.f32.xlu0 %v148
      %v150 = vpop.xlane.xlu0 %149
      %v151 = vadd.f32 %v146, %v150
      %152 = vst.msk [vmem:[#allocation3] sm:$0xff] %vm141, %v151
      %v153 = vld [vmem:[#allocation5] sm:$0xff]
      %v154 = vmul.f32 %v52, %v53
      %v155 = vsel %vm55, %v154, 0.0
      %156 = vadd.xlane.f32.xlu0 %v155
      %v157 = vpop.xlane.xlu0 %156
      %v158 = vadd.f32 %v153, %v157
      %159 = vst.msk [vmem:[#allocation5] sm:$0xff] %vm141, %v158
    $region29: #{tpu_custom_call.1} parent=1 // pred_fallthru
      _
    // Predicated region
    $region30: #{tpu_custom_call.1} parent=1 // pred_check
      %p160 = pneg %p35
    $region31: #{tpu_custom_call.1} parent=1 // pred_check_branch
      %162 = sbr.rel (%p160) target = $region33
    $region32: #{tpu_custom_call.1} parent=1 // pred_region
      %v163 = vld [vmem:[#allocation4] sm:$0xff]
      %v164 = vmax.f32 %v163, 1e-16
      %v165 = vrsqrt.pop %v164
      // Predicated region
      $region34: #{tpu_custom_call.1} parent=32 // pred_check
        %p166 = pneg %p43
      $region35: #{tpu_custom_call.1} parent=32 // pred_check_branch
        %168 = sbr.rel (%p166) target = $region37
      $region36: #{tpu_custom_call.1} parent=32 // pred_region
        %v169 = vld [vmem:[#allocation3] sm:$0xff]
        %v170 = vmax.f32 %v169, 1e-16
        %v171 = vrsqrt.pop %v170
        %v172 = vmul.f32 %v171, 20.0
        %173 = vst.msk [vmem:[#allocation7] sm:$0xff] %vm141, %v172
        %v174 = vld [vmem:[#allocation5] sm:$0xff]
        %v175 = vld [vmem:[#allocation7] sm:$0xff]
        %v176 = vmul.f32 %v174, %v175
        %v177 = vmul.f32 %v176, %v165
        %178 = vst.msk [vmem:[#allocation6] sm:$0xff] %vm141, %v177
      $region37: #{tpu_custom_call.1} parent=32 // pred_fallthru
        _
      %v179 = vld [vmem:[#allocation7] sm:$0xff]
      %v180 = vld [vmem:[#allocation2] sm:$0xff]
      %181 = vxpose.xlu0.b32.start [1/16] %v165, 128
      %182 = vxpose.xlu0.b32.cont [2/16] 0.0, 128
      %183 = vxpose.xlu0.b32.cont [3/16] 0.0, 128
      %184 = vxpose.xlu0.b32.cont [4/16] 0.0, 128
      %185 = vxpose.xlu0.b32.cont [5/16] 0.0, 128
      %186 = vxpose.xlu0.b32.cont [6/16] 0.0, 128
      %187 = vxpose.xlu0.b32.cont [7/16] 0.0, 128
      %188 = vxpose.xlu0.b32.cont [8/16] 0.0, 128
      %189 = vxpose.xlu0.b32.cont [9/16] 0.0, 128
      %190 = vxpose.xlu0.b32.cont [10/16] 0.0, 128
      %191 = vxpose.xlu0.b32.cont [11/16] 0.0, 128
      %192 = vxpose.xlu0.b32.cont [12/16] 0.0, 128
      %193 = vxpose.xlu0.b32.cont [13/16] 0.0, 128
      %194 = vxpose.xlu0.b32.cont [14/16] 0.0, 128
      %195 = vxpose.xlu0.b32.cont [15/16] 0.0, 128
      %196 = vxpose.xlu0.b32.end [16/16] 0.0, 128
      %v197 = vpop.trf.xlu0
      %v198 = vpop.trf.xlu0
      %v199 = vpop.trf.xlu0
      %v200 = vpop.trf.xlu0
      %v201 = vpop.trf.xlu0
      %v202 = vpop.trf.xlu0
      %v203 = vpop.trf.xlu0
      %v204 = vpop.trf.xlu0
      %v205 = vpop.trf.xlu0
      %v206 = vpop.trf.xlu0
      %v207 = vpop.trf.xlu0
      %v208 = vpop.trf.xlu0
      %v209 = vpop.trf.xlu0
      %v210 = vpop.trf.xlu0
      %v211 = vpop.trf.xlu0
      %v212 = vpop.trf.xlu0
      %214 = vset.pattern.permute.xlu0 0
      %215 = vperm.xlu0 %214, %v179
      %v216 = vpop.permute.xlu0 %215
      %v218 = vlaneseq
      %v219 = vshrl.u32 %v218, 7
      %v220 = vsub.s32 0, %v219
      %v221 = vrot.slane %v197, %v220
      %v222 = vmul.f32 %v216, %v221
      %v223 = vmul.f32 %v180, %v222
      %v224 = vld [vmem:[#allocation6] sm:$0xff]
      %226 = vset.pattern.permute.xlu0 0
      %227 = vperm.xlu0 %226, %v224
      %v228 = vpop.permute.xlu0 %227
      %v230 = vsub.f32 %v228, %v223
      %v231 = vsub.f32 0.0, %v230
      %v232 = vmax.f32 %v231, 0.0
      %v233 = vand.u32 2147483647, %v230
      %v234 = vsub.f32 0.0, %v233
      %v235 = vmul.f32 %v234, 1.442695
      %v236 = vpow.pop %v235
      %v237 = vadd.f32 %v236, 1.0
      %v238 = vlog2.pop %v237
      %v239 = vmul.f32 %v238, 0.6931472
      %v240 = vmul.f32 -0.5, %v236
      %v241 = vadd.f32 %v240, 1.0
      %v242 = vmul.f32 %v241, %v236
      %v243 = vand.u32 2147483647, %v236
      %vm244 = vcmp.lt.f32.partialorder %v243, 0.0004427343
      %v245 = vsel %vm244, %v242, %v239
      %v246 = vadd.f32 %v232, %v245
      %v247 = vld [vmem:[#allocation8] sm:$0xff]
      %v248 = vsel %vm133, %v246, 0.0
      %249 = vadd.xlane.f32.xlu0 %v248
      %v250 = vpop.xlane.xlu0 %249
      %v251 = vadd.f32 %v247, %v250
      %252 = vst.msk [vmem:[#allocation8] sm:$0xff] %vm141, %v251
      // Predicated region
      $region38: #{tpu_custom_call.1} parent=32 // pred_check
        %p253 = pneg %p43
      $region39: #{tpu_custom_call.1} parent=32 // pred_check_branch
        %255 = sbr.rel (%p253) target = $region41
      $region40: #{tpu_custom_call.1} parent=32 // pred_region
        %v256 = vld [vmem:[#allocation8] sm:$0xff]
        %257 = vst.msk [vmem:[%s2] sm:$0xff] %vm141, %v256
      $region41: #{tpu_custom_call.1} parent=32 // pred_fallthru
        _
    $region33: #{tpu_custom_call.1} parent=1 // pred_fallthru
      _
    // Predicated region
    $region42: #{tpu_custom_call.1} parent=1 // pred_check
      _
    $region43: #{tpu_custom_call.1} parent=1 // pred_check_branch
      %259 = sbr.rel (0) target = $region45
    $region44: #{tpu_custom_call.1} parent=1 // pred_region
      _
    $region45: #{tpu_custom_call.1} parent=1 // pred_fallthru
      _
    // Predicated region
    $region46: #{tpu_custom_call.1} parent=1 // pred_check
      _
    $region47: #{tpu_custom_call.1} parent=1 // pred_check_branch
      %261 = sbr.rel (0) target = $region49
    $region48: #{tpu_custom_call.1} parent=1 // pred_region
      _
    $region49: #{tpu_custom_call.1} parent=1 // pred_fallthru
      _
    %262 = vsyncpa [#allocation10], 1
    %263 = vsyncpa [#allocation12], 1

</llo_original>
